<compile_context>
chip_gen: v7x
topology: tpu7x:2x2x1
jax: 0.10.0
libtpu: 0.0.40
codegen_flags: <defaults>
</compile_context>

<pallas_src>
import jax
import jax.numpy as jnp
from jax.experimental import pallas as pl
from jax.experimental.pallas import tpu as pltpu

OUT_CH = 64      # Conv1d out_channels
HIDDEN = 512     # Linear out_features


# ------------------------------ Pallas kernel ------------------------------- #

def fused_cnn_kernel(x_ref, wband_ref, bc_ref, wl_ref, bl_ref, o_ref):
    """Conv1d(k=2, pad=1) + MaxPool1d(2,1) + flatten + Linear for one batch tile.

    x_ref    : (TB, L*C)        packed rows: col = t*C + c
    wband_ref: (L*C, (L+1)*64)  block-banded conv weight (both taps, all positions)
    bc_ref   : (1, L*64)        conv bias tiled per pooled position (col = t*64+oc)
    wl_ref   : (L*64, 512)      linear weight, rows permuted to t*64+oc order
    bl_ref   : (1, 512)         linear bias
    o_ref    : (TB, 512)
    """
    l64 = wl_ref.shape[0]                                   # L * 64

    # Every conv output position, both taps, in one lane-dense MXU matmul.
    conv = jnp.dot(x_ref[...], wband_ref[...],
                   preferred_element_type=jnp.float32)      # (TB, (L+1)*64)

    # TODO(synk): Dropout(0.5) is identity in eval/inference; a training-mode
    # path would mask here with pltpu.prng_seed / pltpu.prng_random_bits.

    # MaxPool1d(k=2, s=1): adjacent-position max. The conv bias is identical on
    # both max operands, so it commutes through the max and is added once after.
    pooled = jnp.maximum(conv[:, :l64], conv[:, OUT_CH:]) + bc_ref[...]

    # PyTorch's NCW .view(batch, -1) flatten is absorbed into the pre-permuted
    # rows of wl_ref; single (TB, L*64) @ (L*64, 512) dot.
    o_ref[...] = (jnp.dot(pooled, wl_ref[...],
                          preferred_element_type=jnp.float32)
                  + bl_ref[...]).astype(o_ref.dtype)


# --------------------------------- wrapper ----------------------------------- #

def _batch_tiling(batch):
    """Pick (TB, B_pad): batch tile (multiple of 8, <= 256) and padded batch."""
    bp = -(-batch // 8) * 8                                 # sublane-align
    if bp <= 256:
        tb = bp
    else:
        tb = max(t for t in range(8, 257, 8) if bp % t == 0)
    # v7x has 2 TensorCores: prefer >= 2 grid steps while keeping TB >= 128
    # (don't shrink below ~128 just for this on v5e/v6e).
    if bp // tb < 2 and tb >= 256:
        tb //= 2
    b_pad = -(-bp // tb) * tb
    return tb, b_pad


def cnn_module_forward(protein_ft, params):
    """protein_ft: (B, L, C) == PyTorch batch * len * amino_dim."""
    B, L, C = protein_ft.shape
    w_conv, b_conv = params["w_conv"], params["b_conv"]     # (64, C, 2), (64,)
    w_lin, b_lin = params["w_lin"], params["b_lin"]         # (512, 64*L), (512,)
    f32 = jnp.float32

    TB, B_pad = _batch_tiling(B)
    nbt = B_pad // TB

    # ---- trace-time input packing: free reshape + zero batch padding ----
    x2d = protein_ft.reshape(B, L * C).astype(f32)
    if B_pad != B:
        x2d = jnp.pad(x2d, ((0, B_pad - B), (0, 0)))

    # ---- trace-time weight prep (tiny, weights only) ----
    # Block-banded conv weight: wband[t*C + c, p*64 + oc] =
    #     W[oc, c, 0] if p == t + 1   (tap k=0 sees x_pad[p]   = x[p-1])
    #   + W[oc, c, 1] if p == t       (tap k=1 sees x_pad[p+1] = x[p])
    # so (x2d @ wband)[:, p*64 + oc] reproduces Conv1d(k=2, padding=1) exactly
    # (zero padding handled by the band boundaries).
    w0t = jnp.transpose(w_conv[:, :, 0]).astype(f32)        # (C, 64)
    w1t = jnp.transpose(w_conv[:, :, 1]).astype(f32)        # (C, 64)
    t_ix = jnp.arange(L)[:, None]
    p_ix = jnp.arange(L + 1)[None, :]
    m0 = (p_ix == t_ix + 1).astype(f32)                     # (L, L+1)
    m1 = (p_ix == t_ix).astype(f32)
    wband = (jnp.einsum("tp,co->tcpo", m0, w0t)
             + jnp.einsum("tp,co->tcpo", m1, w1t)
             ).reshape(L * C, (L + 1) * OUT_CH)
    # TODO(synk): wband is O(L^2 * C * 64) bytes; for very long sequences switch
    # to a per-position tap loop with a K-gridded linear instead of a full band.

    bc = jnp.tile(b_conv.astype(f32), L)[None, :]           # (1, L*64)
    # Permute w_lin columns from the PyTorch NCW flatten order (oc*L + t) to the
    # kernel's pooled-slab order (t*64 + oc) and pre-transpose to (in, out).
    wl = (w_lin.astype(f32).reshape(HIDDEN, OUT_CH, L)
          .transpose(2, 1, 0).reshape(L * OUT_CH, HIDDEN))
    bl = b_lin.astype(f32)[None, :]

    # ---- explicit VMEM budget (v5e default scoped 16 MiB, v7x 32 MiB) ----
    est = 4 * (2 * TB * L * C                                # x (double-buffered)
               + 2 * L * C * (L + 1) * OUT_CH                # wband
               + 2 * L * OUT_CH * HIDDEN                     # wl
               + 2 * TB * HIDDEN                             # out
               + 3 * TB * (L + 1) * OUT_CH                   # conv/pooled temps
               + L * OUT_CH + HIDDEN)                        # biases
    vmem_limit = int(min(max(2 * est, 16 << 20), 64 << 20))

    out = pl.pallas_call(
        fused_cnn_kernel,
        out_shape=jax.ShapeDtypeStruct((B_pad, HIDDEN), jnp.float32),
        grid=(nbt,),
        in_specs=[
            pl.BlockSpec((TB, L * C), lambda i: (i, 0)),
            # Constant index_maps: weights/biases stay resident across steps.
            pl.BlockSpec((L * C, (L + 1) * OUT_CH), lambda i: (0, 0)),
            pl.BlockSpec((1, L * OUT_CH), lambda i: (0, 0)),
            pl.BlockSpec((L * OUT_CH, HIDDEN), lambda i: (0, 0)),
            pl.BlockSpec((1, HIDDEN), lambda i: (0, 0)),
        ],
        out_specs=pl.BlockSpec((TB, HIDDEN), lambda i: (i, 0)),
        compiler_params=pltpu.CompilerParams(
            dimension_semantics=("parallel",),
            vmem_limit_bytes=vmem_limit),
    )(x2d, wband, bc, wl, bl)
    return out[:B]


# ----------------------------- pure-JAX reference ---------------------------- #

def reference_forward(protein_ft, params):
    w_conv, b_conv = params["w_conv"], params["b_conv"]
    w_lin, b_lin = params["w_lin"], params["b_lin"]
    xt = jnp.transpose(protein_ft, (0, 2, 1))                # (B, C, L)
    conv = jax.lax.conv_general_dilated(
        xt, w_conv, window_strides=(1,), padding=((1, 1),),
        dimension_numbers=("NCH", "OIH", "NCH")) + b_conv[None, :, None]
    pooled = jax.lax.reduce_window(conv, -jnp.inf, jax.lax.max,
                                   (1, 1, 2), (1, 1, 1), "VALID")
    flat = pooled.reshape(protein_ft.shape[0], -1)
    return flat @ w_lin.T + b_lin


# ----------------------------------- main ------------------------------------ #

if __name__ == "__main__":
    B, L, C = 2, 8, 4     # batch, seq len (== l), amino_dim (== in_channel)
    key = jax.random.PRNGKey(0)
    k1, k2, k3, k4, k5 = jax.random.split(key, 5)

    params = {
        "w_conv": jax.random.normal(k1, (OUT_CH, C, 2), jnp.float32) * 0.1,
        "b_conv": jax.random.normal(k2, (OUT_CH,), jnp.float32) * 0.1,
        "w_lin":  jax.random.normal(k3, (HIDDEN, OUT_CH * L), jnp.float32) * 0.05,
        "b_lin":  jax.random.normal(k4, (HIDDEN,), jnp.float32) * 0.05,
    }
    protein_ft = jax.random.normal(k5, (B, L, C), jnp.float32)

    out = jax.block_until_ready(cnn_module_forward(protein_ft, params))
    ref = reference_forward(protein_ft, params)

    assert out.shape == (B, HIDDEN), out.shape
    assert jnp.allclose(out, ref, atol=1e-4, rtol=1e-4), \
        float(jnp.max(jnp.abs(out - ref)))
    print("KERNEL_OK")
</pallas_src>

<mosaic_0001>
module attributes {stable_mosaic.version = 11 : i64} {
  func.func @fused_cnn_kernel(%arg0: i32, %arg1: memref<8x32xf32, #tpu.memory_space<vmem>>, %arg2: memref<32x576xf32, #tpu.memory_space<vmem>>, %arg3: memref<1x512xf32, #tpu.memory_space<vmem>>, %arg4: memref<512x512xf32, #tpu.memory_space<vmem>>, %arg5: memref<1x512xf32, #tpu.memory_space<vmem>>, %arg6: memref<8x512xf32, #tpu.memory_space<vmem>>) attributes {dimension_semantics = [#tpu.dimension_semantics<parallel>], iteration_bounds = array<i64: 1>, scalar_prefetch = 0 : i64, scratch_operands = 0 : i64, tpu.core_type = #tpu.core_type<tc>, window_params = [{transform_indices = @transform_0, window_bounds = array<i64: 8, 32>}, {pipeline_mode = #tpu.pipeline_mode<synchronous>, transform_indices = @transform_1, window_bounds = array<i64: 32, 576>}, {pipeline_mode = #tpu.pipeline_mode<synchronous>, transform_indices = @transform_2, window_bounds = array<i64: 1, 512>}, {pipeline_mode = #tpu.pipeline_mode<synchronous>, transform_indices = @transform_3, window_bounds = array<i64: 512, 512>}, {pipeline_mode = #tpu.pipeline_mode<synchronous>, transform_indices = @transform_4, window_bounds = array<i64: 1, 512>}, {transform_indices = @transform_5, window_bounds = array<i64: 8, 512>}]} {
    %c0 = arith.constant 0 : index
    %c0_0 = arith.constant 0 : index
    %0 = vector.load %arg1[%c0, %c0_0] : memref<8x32xf32, #tpu.memory_space<vmem>>, vector<8x32xf32>
    %c0_1 = arith.constant 0 : index
    %c0_2 = arith.constant 0 : index
    %1 = vector.load %arg2[%c0_1, %c0_2] : memref<32x576xf32, #tpu.memory_space<vmem>>, vector<32x576xf32>
    %cst = arith.constant dense<0.000000e+00> : vector<8x576xf32>
    %2 = tpu.matmul %0, %1, %cst {dimension_numbers = #tpu.dot_dimension_numbers<[1], [0], [0], [1], [0, 0, 1, 1], [], []>} : vector<8x32xf32>, vector<32x576xf32>, vector<8x576xf32> -> vector<8x576xf32>
    %3 = vector.extract_strided_slice %2 {offsets = [0, 0], sizes = [8, 512], strides = [1, 1]} : vector<8x576xf32> to vector<8x512xf32>
    %4 = vector.extract_strided_slice %2 {offsets = [0, 64], sizes = [8, 512], strides = [1, 1]} : vector<8x576xf32> to vector<8x512xf32>
    %5 = arith.maximumf %3, %4 : vector<8x512xf32>
    %c0_3 = arith.constant 0 : index
    %c0_4 = arith.constant 0 : index
    %6 = vector.load %arg3[%c0_3, %c0_4] : memref<1x512xf32, #tpu.memory_space<vmem>>, vector<1x512xf32>
    %7 = vector.broadcast %6 : vector<1x512xf32> to vector<8x512xf32>
    %8 = arith.addf %5, %7 : vector<8x512xf32>
    %c0_5 = arith.constant 0 : index
    %c0_6 = arith.constant 0 : index
    %9 = vector.load %arg4[%c0_5, %c0_6] : memref<512x512xf32, #tpu.memory_space<vmem>>, vector<512x512xf32>
    %cst_7 = arith.constant dense<0.000000e+00> : vector<8x512xf32>
    %10 = tpu.matmul %8, %9, %cst_7 {dimension_numbers = #tpu.dot_dimension_numbers<[1], [0], [0], [1], [0, 0, 1, 1], [], []>} : vector<8x512xf32>, vector<512x512xf32>, vector<8x512xf32> -> vector<8x512xf32>
    %c0_8 = arith.constant 0 : index
    %c0_9 = arith.constant 0 : index
    %11 = vector.load %arg5[%c0_8, %c0_9] : memref<1x512xf32, #tpu.memory_space<vmem>>, vector<1x512xf32>
    %12 = vector.broadcast %11 : vector<1x512xf32> to vector<8x512xf32>
    %13 = arith.addf %10, %12 : vector<8x512xf32>
    %c0_10 = arith.constant 0 : index
    %c0_11 = arith.constant 0 : index
    %14 = vector.load %arg6[%c0_10, %c0_11] : memref<8x512xf32, #tpu.memory_space<vmem>>, vector<8x512xf32>
    tpu.vector_store %arg6[%c0_10, %c0_11], %13 {strides = array<i32>} : memref<8x512xf32, #tpu.memory_space<vmem>>, vector<8x512xf32>,
    return
  }
  func.func @transform_0(%arg0: i32) -> (i32, i32) {
    %c0_i32 = arith.constant 0 : i32
    %c0_i32_0 = arith.constant 0 : i32
    return %arg0, %c0_i32 : i32, i32
  }
  func.func @transform_1(%arg0: i32) -> (i32, i32) {
    %c0_i32 = arith.constant 0 : i32
    %c0_i32_0 = arith.constant 0 : i32
    %c0_i32_1 = arith.constant 0 : i32
    return %c0_i32, %c0_i32_0 : i32, i32
  }
  func.func @transform_2(%arg0: i32) -> (i32, i32) {
    %c0_i32 = arith.constant 0 : i32
    %c0_i32_0 = arith.constant 0 : i32
    %c0_i32_1 = arith.constant 0 : i32
    return %c0_i32, %c0_i32_0 : i32, i32
  }
  func.func @transform_3(%arg0: i32) -> (i32, i32) {
    %c0_i32 = arith.constant 0 : i32
    %c0_i32_0 = arith.constant 0 : i32
    %c0_i32_1 = arith.constant 0 : i32
    return %c0_i32, %c0_i32_0 : i32, i32
  }
  func.func @transform_4(%arg0: i32) -> (i32, i32) {
    %c0_i32 = arith.constant 0 : i32
    %c0_i32_0 = arith.constant 0 : i32
    %c0_i32_1 = arith.constant 0 : i32
    return %c0_i32, %c0_i32_0 : i32, i32
  }
  func.func @transform_5(%arg0: i32) -> (i32, i32) {
    %c0_i32 = arith.constant 0 : i32
    %c0_i32_0 = arith.constant 0 : i32
    return %arg0, %c0_i32 : i32, i32
  }
}

</mosaic_0001>

<llo_original>
// kernel: tpu_custom_call.1
$region0: #{tpu_custom_call.1}
  #allocation0 [shape = 'u32[]', space=smem, size = 0x4, offset = 0x4, fixed_abs, tag = 'smem constant byte address 0x4 - core index']
  #allocation1 [shape = 'u32[144,128]{1,0:T(1,128)}', space=vmem, size = 0x12000, scoped, tag = 'internal scratch']
  %s0 = inlined_call_operand.hbm [shape: f32[8,32], index: 0, kind: input, shape index: {}]
  %s1 = inlined_call_operand.hbm [shape: f32[32,576], index: 1, kind: input, shape index: {}]
  %s2 = inlined_call_operand.vmem [shape: f32[1,512], index: 2, kind: input, shape index: {}]
  %s3 = inlined_call_operand.hbm [shape: f32[512,512], index: 3, kind: input, shape index: {}]
  %s4 = inlined_call_operand.vmem [shape: f32[1,512], index: 4, kind: input, shape index: {}]
  %s5 = inlined_call_operand.hbm [shape: f32[8,512], index: 5, kind: output, shape index: {}]
  %s6 = sld [smem:[#allocation0]]
  $region42: #{tpu_custom_call.1} parent=0
    _
  %s8 = ssub.s32 1, %s6
  %s9 = scalar_select 0, %s8, %s6
  $region1: #{tpu_custom_call.1} parent=0
    #allocation2 [shape = 'u8[4096]{0}', space=vmem, size = 0x1000, scoped, tag = 'input window, operand 0, single buffered']
    #allocation3 [shape = 's32[1]{0}', space=sflag, size = 0x4, scoped, tag = 'scoped memory for tpu_custom_call.1']
    #allocation4 [shape = 's32[1]{0}', space=sflag, size = 0x4, scoped, tag = 'scoped memory for tpu_custom_call.1']
    #allocation5 [shape = 'u8[81920]{0}', space=vmem, size = 0x14000, scoped, tag = 'input window, operand 1, single buffered']
    #allocation6 [shape = 's32[1]{0}', space=sflag, size = 0x4, scoped, tag = 'scoped memory for tpu_custom_call.1']
    #allocation7 [shape = 'u8[1048576]{0}', space=vmem, size = 0x100000, scoped, tag = 'input window, operand 3, single buffered']
    #allocation8 [shape = 'u8[16384]{0}', space=vmem, size = 0x4000, scoped, tag = 'output window, operand 0, single buffered']
    %10 = vsyncpa [#allocation3], 0
    %11 = vsyncpa [#allocation6], 0
    %12 = vsyncpa [#allocation4], 0
    // Predicated region
    $region2: #{tpu_custom_call.1} parent=1 // pred_check
      _
    $region3: #{tpu_custom_call.1} parent=1 // pred_check_branch
      %14 = sbr.rel (0) target = $region5
    $region4: #{tpu_custom_call.1} parent=1 // pred_region
      %s16 = ssub.s32 128, 128
      %17 = vsyncadd [#allocation3], %s16
      %s19 = sshll.u32 [#allocation2], 4
      %s20 = int_to_ptr.vmem [resolvable:$true] %s19
      %22 = dma.hbm_to_vmem [thread:$0]  %s0, 128, %s20, [#allocation3]
    $region5: #{tpu_custom_call.1} parent=1 // pred_fallthru
      _
    // Predicated region
    $region6: #{tpu_custom_call.1} parent=1 // pred_check
      _
    $region7: #{tpu_custom_call.1} parent=1 // pred_check_branch
      %24 = sbr.rel (0) target = $region9
    $region8: #{tpu_custom_call.1} parent=1 // pred_region
      %s26 = ssub.s32 2560, 2560
      %27 = vsyncadd [#allocation6], %s26
      %s28 = sshll.u32 [#allocation5], 4
      %s29 = int_to_ptr.vmem [resolvable:$true] %s28
      %34 = dma.hbm_to_vmem [thread:$0]  %s1, 2560, %s29, [#allocation6], 640, 640, 40
    $region9: #{tpu_custom_call.1} parent=1 // pred_fallthru
      _
    // Predicated region
    $region10: #{tpu_custom_call.1} parent=1 // pred_check
      _
    $region11: #{tpu_custom_call.1} parent=1 // pred_check_branch
      %36 = sbr.rel (0) target = $region13
    $region12: #{tpu_custom_call.1} parent=1 // pred_region
      _
    $region13: #{tpu_custom_call.1} parent=1 // pred_fallthru
      _
    // Predicated region
    $region14: #{tpu_custom_call.1} parent=1 // pred_check
      _
    $region15: #{tpu_custom_call.1} parent=1 // pred_check_branch
      %38 = sbr.rel (0) target = $region17
    $region16: #{tpu_custom_call.1} parent=1 // pred_region
      %s40 = ssub.s32 32768, 32768
      %41 = vsyncadd [#allocation6], %s40
      %s42 = sshll.u32 [#allocation7], 4
      %s43 = int_to_ptr.vmem [resolvable:$true] %s42
      %48 = dma.hbm_to_vmem [thread:$0]  %s3, 32768, %s43, [#allocation6], 512, 512, 32
    $region17: #{tpu_custom_call.1} parent=1 // pred_fallthru
      _
    // Predicated region
    $region18: #{tpu_custom_call.1} parent=1 // pred_check
      _
    $region19: #{tpu_custom_call.1} parent=1 // pred_check_branch
      %50 = sbr.rel (0) target = $region21
    $region20: #{tpu_custom_call.1} parent=1 // pred_region
      _
    $region21: #{tpu_custom_call.1} parent=1 // pred_fallthru
      _
    // Predicated region
    $region22: #{tpu_custom_call.1} parent=1 // pred_check
      _
    $region23: #{tpu_custom_call.1} parent=1 // pred_check_branch
      %52 = sbr.rel (0) target = $region25
    $region24: #{tpu_custom_call.1} parent=1 // pred_region
      %53 = dma.done [#allocation3], 128
    $region25: #{tpu_custom_call.1} parent=1 // pred_fallthru
      _
    // Predicated region
    $region26: #{tpu_custom_call.1} parent=1 // pred_check
      _
    $region27: #{tpu_custom_call.1} parent=1 // pred_check_branch
      %55 = sbr.rel (0) target = $region29
    $region28: #{tpu_custom_call.1} parent=1 // pred_region
      %56 = dma.done [#allocation6], 2560
    $region29: #{tpu_custom_call.1} parent=1 // pred_fallthru
      _
    // Predicated region
    $region30: #{tpu_custom_call.1} parent=1 // pred_check
      _
    $region31: #{tpu_custom_call.1} parent=1 // pred_check_branch
      %58 = sbr.rel (0) target = $region33
    $region32: #{tpu_custom_call.1} parent=1 // pred_region
      %59 = dma.done [#allocation6], 32768
    $region33: #{tpu_custom_call.1} parent=1 // pred_fallthru
      _
    %v60 = vld [vmem:[#allocation2] sm:$0xff]
    %v61 = vld [vmem:[#allocation5] sm:$0xff]
    %v62 = vld [vmem:[#allocation5 + $0x8] sm:$0xff]
    %v63 = vld [vmem:[#allocation5 + $0x10] sm:$0xff]
    %v64 = vld [vmem:[#allocation5 + $0x18] sm:$0xff]
    %v65 = vld [vmem:[#allocation5 + $0x20] sm:$0xff]
    %v66 = vld [vmem:[#allocation5 + $0x28] sm:$0xff]
    %v67 = vld [vmem:[#allocation5 + $0x30] sm:$0xff]
    %v68 = vld [vmem:[#allocation5 + $0x38] sm:$0xff]
    %v69 = vld [vmem:[#allocation5 + $0x40] sm:$0xff]
    %v70 = vld [vmem:[#allocation5 + $0x48] sm:$0xff]
    %v71 = vld [vmem:[#allocation5 + $0x50] sm:$0xff]
    %v72 = vld [vmem:[#allocation5 + $0x58] sm:$0xff]
    %v73 = vld [vmem:[#allocation5 + $0x60] sm:$0xff]
    %v74 = vld [vmem:[#allocation5 + $0x68] sm:$0xff]
    %v75 = vld [vmem:[#allocation5 + $0x70] sm:$0xff]
    %v76 = vld [vmem:[#allocation5 + $0x78] sm:$0xff]
    %v77 = vld [vmem:[#allocation5 + $0x80] sm:$0xff]
    %v78 = vld [vmem:[#allocation5 + $0x88] sm:$0xff]
    %v79 = vld [vmem:[#allocation5 + $0x90] sm:$0xff]
    %v80 = vld [vmem:[#allocation5 + $0x98] sm:$0xff]
    %vm81 = vcmask 261120
    %v83 = vsel %vm81, %v60, 0
    %85 = vmatprep.subr.mxu0 %v62
    %86 = vmatpush1.msra.mxu0 %v61
    %87 = vmatprep.subr.mxu0 %v67
    %88 = vmatpush1.msra.mxu0 %v66
    %89 = vmatprep.subr.mxu0 %v72
    %90 = vmatpush1.msra.mxu0 %v71
    %91 = vmatprep.subr.mxu0 %v77
    %92 = vmatpush1.msra.mxu0 %v76
    %93 = vmatprep.subr.mxu0 0.0
    %94 = vmatpush1.msra.mxu0 0.0
    %95 = vmatprep.subr.mxu0 0.0
    %96 = vmatpush1.msra.mxu0 0.0
    %97 = vmatprep.subr.mxu0 0.0
    %98 = vmatpush1.msra.mxu0 0.0
    %99 = vmatprep.subr.mxu0 0.0
    %100 = vmatpush1.msra.mxu0 0.0
    %101 = vmatprep.subr.mxu0 0.0
    %102 = vmatpush1.msra.mxu0 0.0
    %103 = vmatprep.subr.mxu0 0.0
    %104 = vmatpush1.msra.mxu0 0.0
    %105 = vmatprep.subr.mxu0 0.0
    %106 = vmatpush1.msra.mxu0 0.0
    %107 = vmatprep.subr.mxu0 0.0
    %108 = vmatpush1.msra.mxu0 0.0
    %109 = vmatprep.subr.mxu0 0.0
    %110 = vmatpush1.msra.mxu0 0.0
    %111 = vmatprep.subr.mxu0 0.0
    %112 = vmatpush1.msra.mxu0 0.0
    %113 = vmatprep.subr.mxu0 0.0
    %114 = vmatpush1.msra.mxu0 0.0
    %115 = vmatprep.subr.mxu0 0.0
    %116 = vmatpush1.msra.mxu0 0.0
    %117 = vmatprep.subr.mxu0 0.0
    %118 = vmatpush1.msra.mxu0 0.0
    %119 = vmatprep.subr.mxu0 0.0
    %120 = vmatpush1.msra.mxu0 0.0
    %121 = vmatprep.subr.mxu0 0.0
    %122 = vmatpush1.msra.mxu0 0.0
    %123 = vmatprep.subr.mxu0 0.0
    %124 = vmatpush1.msra.mxu0 0.0
    %125 = vmatprep.subr.mxu0 0.0
    %126 = vmatpush1.msra.mxu0 0.0
    %127 = vmatprep.subr.mxu0 0.0
    %128 = vmatpush1.msra.mxu0 0.0
    %129 = vmatprep.subr.mxu0 0.0
    %130 = vmatpush1.msra.mxu0 0.0
    %131 = vmatprep.subr.mxu0 0.0
    %132 = vmatpush1.msra.mxu0 0.0
    %133 = vmatprep.subr.mxu0 0.0
    %134 = vmatpush1.msra.mxu0 0.0
    %135 = vmatprep.subr.mxu0 0.0
    %136 = vmatpush1.msra.mxu0 0.0
    %137 = vmatprep.subr.mxu0 0.0
    %138 = vmatpush1.msra.mxu0 0.0
    %139 = vmatprep.subr.mxu0 0.0
    %140 = vmatpush1.msra.mxu0 0.0
    %141 = vmatprep.subr.mxu0 0.0
    %142 = vmatpush1.msra.mxu0 0.0
    %143 = vmatprep.subr.mxu0 0.0
    %144 = vmatpush1.msra.mxu0 0.0
    %145 = vmatprep.subr.mxu0 0.0
    %146 = vmatpush1.msra.mxu0 0.0
    %147 = vmatprep.subr.mxu0 0.0
    %148 = vmatpush1.msra.mxu0 0.0
    %149 = vmatprep.mubr.f32.mxu0 0.0
    %150 = vmatmul.mubr.f32.gmra.mrb[0].mxu0 %v83
    %v151 = vpop.f32.mrb[0].mxu0
    %v152 = vadd.f32 0.0, %v151
    %v153 = vpop.f32.mrb[0].mxu0
    %v154 = vadd.f32 0.0, %v153
    %155 = vdwg.mxu0
    %156 = vmatprep.subr.mxu0 %v64
    %157 = vmatpush1.msra.mxu0 %v63
    %158 = vmatprep.subr.mxu0 %v69
    %159 = vmatpush1.msra.mxu0 %v68
    %160 = vmatprep.subr.mxu0 %v74
    %161 = vmatpush1.msra.mxu0 %v73
    %162 = vmatprep.subr.mxu0 %v79
    %163 = vmatpush1.msra.mxu0 %v78
    %164 = vmatprep.subr.mxu0 0.0
    %165 = vmatpush1.msra.mxu0 0.0
    %166 = vmatprep.subr.mxu0 0.0
    %167 = vmatpush1.msra.mxu0 0.0
    %168 = vmatprep.subr.mxu0 0.0
    %169 = vmatpush1.msra.mxu0 0.0
    %170 = vmatprep.subr.mxu0 0.0
    %171 = vmatpush1.msra.mxu0 0.0
    %172 = vmatprep.subr.mxu0 0.0
    %173 = vmatpush1.msra.mxu0 0.0
    %174 = vmatprep.subr.mxu0 0.0
    %175 = vmatpush1.msra.mxu0 0.0
    %176 = vmatprep.subr.mxu0 0.0
    %177 = vmatpush1.msra.mxu0 0.0
    %178 = vmatprep.subr.mxu0 0.0
    %179 = vmatpush1.msra.mxu0 0.0
    %180 = vmatprep.subr.mxu0 0.0
    %181 = vmatpush1.msra.mxu0 0.0
    %182 = vmatprep.subr.mxu0 0.0
    %183 = vmatpush1.msra.mxu0 0.0
    %184 = vmatprep.subr.mxu0 0.0
    %185 = vmatpush1.msra.mxu0 0.0
    %186 = vmatprep.subr.mxu0 0.0
    %187 = vmatpush1.msra.mxu0 0.0
    %188 = vmatprep.subr.mxu0 0.0
    %189 = vmatpush1.msra.mxu0 0.0
    %190 = vmatprep.subr.mxu0 0.0
    %191 = vmatpush1.msra.mxu0 0.0
    %192 = vmatprep.subr.mxu0 0.0
    %193 = vmatpush1.msra.mxu0 0.0
    %194 = vmatprep.subr.mxu0 0.0
    %195 = vmatpush1.msra.mxu0 0.0
    %196 = vmatprep.subr.mxu0 0.0
    %197 = vmatpush1.msra.mxu0 0.0
    %198 = vmatprep.subr.mxu0 0.0
    %199 = vmatpush1.msra.mxu0 0.0
    %200 = vmatprep.subr.mxu0 0.0
    %201 = vmatpush1.msra.mxu0 0.0
    %202 = vmatprep.subr.mxu0 0.0
    %203 = vmatpush1.msra.mxu0 0.0
    %204 = vmatprep.subr.mxu0 0.0
    %205 = vmatpush1.msra.mxu0 0.0
    %206 = vmatprep.subr.mxu0 0.0
    %207 = vmatpush1.msra.mxu0 0.0
    %208 = vmatprep.subr.mxu0 0.0
    %209 = vmatpush1.msra.mxu0 0.0
    %210 = vmatprep.subr.mxu0 0.0
    %211 = vmatpush1.msra.mxu0 0.0
    %212 = vmatprep.subr.mxu0 0.0
    %213 = vmatpush1.msra.mxu0 0.0
    %214 = vmatprep.subr.mxu0 0.0
    %215 = vmatpush1.msra.mxu0 0.0
    %216 = vmatprep.subr.mxu0 0.0
    %217 = vmatpush1.msra.mxu0 0.0
    %218 = vmatprep.subr.mxu0 0.0
    %219 = vmatpush1.msra.mxu0 0.0
    %220 = vmatprep.mubr.f32.mxu0 0.0
    %221 = vmatmul.mubr.f32.gmra.mrb[0].mxu0 %v83
    %v222 = vpop.f32.mrb[0].mxu0
    %v223 = vadd.f32 0.0, %v222
    %v224 = vpop.f32.mrb[0].mxu0
    %v225 = vadd.f32 0.0, %v224
    %226 = vdwg.mxu0
    %227 = vmatprep.subr.mxu0 0.0
    %228 = vmatpush1.msra.mxu0 %v65
    %229 = vmatprep.subr.mxu0 0.0
    %230 = vmatpush1.msra.mxu0 %v70
    %231 = vmatprep.subr.mxu0 0.0
    %232 = vmatpush1.msra.mxu0 %v75
    %233 = vmatprep.subr.mxu0 0.0
    %234 = vmatpush1.msra.mxu0 %v80
    %235 = vmatprep.subr.mxu0 0.0
    %236 = vmatpush1.msra.mxu0 0.0
    %237 = vmatprep.subr.mxu0 0.0
    %238 = vmatpush1.msra.mxu0 0.0
    %239 = vmatprep.subr.mxu0 0.0
    %240 = vmatpush1.msra.mxu0 0.0
    %241 = vmatprep.subr.mxu0 0.0
    %242 = vmatpush1.msra.mxu0 0.0
    %243 = vmatprep.subr.mxu0 0.0
    %244 = vmatpush1.msra.mxu0 0.0
    %245 = vmatprep.subr.mxu0 0.0
    %246 = vmatpush1.msra.mxu0 0.0
    %247 = vmatprep.subr.mxu0 0.0
    %248 = vmatpush1.msra.mxu0 0.0
    %249 = vmatprep.subr.mxu0 0.0
    %250 = vmatpush1.msra.mxu0 0.0
    %251 = vmatprep.subr.mxu0 0.0
    %252 = vmatpush1.msra.mxu0 0.0
    %253 = vmatprep.subr.mxu0 0.0
    %254 = vmatpush1.msra.mxu0 0.0
    %255 = vmatprep.subr.mxu0 0.0
    %256 = vmatpush1.msra.mxu0 0.0
    %257 = vmatprep.subr.mxu0 0.0
    %258 = vmatpush1.msra.mxu0 0.0
    %259 = vmatprep.subr.mxu0 0.0
    %260 = vmatpush1.msra.mxu0 0.0
    %261 = vmatprep.subr.mxu0 0.0
    %262 = vmatpush1.msra.mxu0 0.0
    %263 = vmatprep.subr.mxu0 0.0
    %264 = vmatpush1.msra.mxu0 0.0
    %265 = vmatprep.subr.mxu0 0.0
    %266 = vmatpush1.msra.mxu0 0.0
    %267 = vmatprep.subr.mxu0 0.0
    %268 = vmatpush1.msra.mxu0 0.0
    %269 = vmatprep.subr.mxu0 0.0
    %270 = vmatpush1.msra.mxu0 0.0
    %271 = vmatprep.subr.mxu0 0.0
    %272 = vmatpush1.msra.mxu0 0.0
    %273 = vmatprep.subr.mxu0 0.0
    %274 = vmatpush1.msra.mxu0 0.0
    %275 = vmatprep.subr.mxu0 0.0
    %276 = vmatpush1.msra.mxu0 0.0
    %277 = vmatprep.subr.mxu0 0.0
    %278 = vmatpush1.msra.mxu0 0.0
    %279 = vmatprep.subr.mxu0 0.0
    %280 = vmatpush1.msra.mxu0 0.0
    %281 = vmatprep.subr.mxu0 0.0
    %282 = vmatpush1.msra.mxu0 0.0
    %283 = vmatprep.subr.mxu0 0.0
    %284 = vmatpush1.msra.mxu0 0.0
    %285 = vmatprep.subr.mxu0 0.0
    %286 = vmatpush1.msra.mxu0 0.0
    %287 = vmatprep.subr.mxu0 0.0
    %288 = vmatpush1.msra.mxu0 0.0
    %289 = vmatprep.subr.mxu0 0.0
    %290 = vmatpush1.msra.mxu0 0.0
    %291 = vmatprep.mubr.f32.mxu0 0.0
    %292 = vmatmul.mubr.f32.gmra.mrb[0].mxu0 %v83
    %v293 = vpop.f32.mrb[0].mxu0
    %v294 = vadd.f32 0.0, %v293
    %v295 = vpop.f32.mrb[0].mxu0
    %296 = vdwg.mxu0
    %302 = vrot.lane.b32.xlu0 %v152, 64
    %v303 = vpop.permute.xlu0 %302
    %304 = vrot.lane.b32.xlu0 %v154, 64
    %v305 = vpop.permute.xlu0 %304
    %306 = vrot.lane.b32.xlu0 %v223, 64
    %v307 = vpop.permute.xlu0 %306
    %308 = vrot.lane.b32.xlu0 %v225, 64
    %v309 = vpop.permute.xlu0 %308
    %310 = vrot.lane.b32.xlu0 %v294, 64
    %v311 = vpop.permute.xlu0 %310
    %vm312 = vcmask 523264
    %v313 = vsel %vm312, %v303, %v305
    %v314 = vsel %vm312, %v305, %v307
    %v315 = vsel %vm312, %v307, %v309
    %v316 = vsel %vm312, %v309, %v311
    %v321 = vmax.f32 %v152, %v313
    %v322 = vmax.f32 %v154, %v314
    %v323 = vmax.f32 %v223, %v315
    %v324 = vmax.f32 %v225, %v316
    %v325 = vld [vmem:[%s2] sm:$0xf]
    %v327 = vlaneseq
    %v328 = vshrl.u32 %v327, 7
    %v329 = vsub.s32 0, %v328
    %v330 = vrot.slane %v325, %v329
    %v331 = vlaneseq
    %v332 = vshrl.u32 %v331, 7
    %v333 = vsub.s32 1, %v332
    %v334 = vrot.slane %v325, %v333
    %v335 = vlaneseq
    %v336 = vshrl.u32 %v335, 7
    %v337 = vsub.s32 2, %v336
    %v338 = vrot.slane %v325, %v337
    %v339 = vlaneseq
    %v340 = vshrl.u32 %v339, 7
    %v341 = vsub.s32 3, %v340
    %v342 = vrot.slane %v325, %v341
    %v347 = vadd.f32 %v321, %v330
    %v348 = vadd.f32 %v322, %v334
    %v349 = vadd.f32 %v323, %v338
    %v350 = vadd.f32 %v324, %v342
    %v351 = vld [vmem:[#allocation7] sm:$0xff]
    %v352 = vld [vmem:[#allocation7 + $0x8] sm:$0xff]
    %v353 = vld [vmem:[#allocation7 + $0x10] sm:$0xff]
    %v354 = vld [vmem:[#allocation7 + $0x18] sm:$0xff]
    %v355 = vld [vmem:[#allocation7 + $0x20] sm:$0xff]
    %v356 = vld [vmem:[#allocation7 + $0x28] sm:$0xff]
    %v357 = vld [vmem:[#allocation7 + $0x30] sm:$0xff]
    %v358 = vld [vmem:[#allocation7 + $0x38] sm:$0xff]
    %v359 = vld [vmem:[#allocation7 + $0x40] sm:$0xff]
    %v360 = vld [vmem:[#allocation7 + $0x48] sm:$0xff]
    %v361 = vld [vmem:[#allocation7 + $0x50] sm:$0xff]
    %v362 = vld [vmem:[#allocation7 + $0x58] sm:$0xff]
    %v363 = vld [vmem:[#allocation7 + $0x60] sm:$0xff]
    %v364 = vld [vmem:[#allocation7 + $0x68] sm:$0xff]
    %v365 = vld [vmem:[#allocation7 + $0x70] sm:$0xff]
    %v366 = vld [vmem:[#allocation7 + $0x78] sm:$0xff]
    %v367 = vld [vmem:[#allocation7 + $0x80] sm:$0xff]
    %v368 = vld [vmem:[#allocation7 + $0x88] sm:$0xff]
    %v369 = vld [vmem:[#allocation7 + $0x90] sm:$0xff]
    %v370 = vld [vmem:[#allocation7 + $0x98] sm:$0xff]
    %v371 = vld [vmem:[#allocation7 + $0xa0] sm:$0xff]
    %v372 = vld [vmem:[#allocation7 + $0xa8] sm:$0xff]
    %v373 = vld [vmem:[#allocation7 + $0xb0] sm:$0xff]
    %v374 = vld [vmem:[#allocation7 + $0xb8] sm:$0xff]
    %v375 = vld [vmem:[#allocation7 + $0xc0] sm:$0xff]
    %v376 = vld [vmem:[#allocation7 + $0xc8] sm:$0xff]
    %v377 = vld [vmem:[#allocation7 + $0xd0] sm:$0xff]
    %v378 = vld [vmem:[#allocation7 + $0xd8] sm:$0xff]
    %v379 = vld [vmem:[#allocation7 + $0xe0] sm:$0xff]
    %v380 = vld [vmem:[#allocation7 + $0xe8] sm:$0xff]
    %v381 = vld [vmem:[#allocation7 + $0xf0] sm:$0xff]
    %v382 = vld [vmem:[#allocation7 + $0xf8] sm:$0xff]
    %v383 = vld [vmem:[#allocation7 + $0x100] sm:$0xff]
    %v384 = vld [vmem:[#allocation7 + $0x108] sm:$0xff]
    %v385 = vld [vmem:[#allocation7 + $0x110] sm:$0xff]
    %v386 = vld [vmem:[#allocation7 + $0x118] sm:$0xff]
    %v387 = vld [vmem:[#allocation7 + $0x120] sm:$0xff]
    %v388 = vld [vmem:[#allocation7 + $0x128] sm:$0xff]
    %v389 = vld [vmem:[#allocation7 + $0x130] sm:$0xff]
    %v390 = vld [vmem:[#allocation7 + $0x138] sm:$0xff]
    %v391 = vld [vmem:[#allocation7 + $0x140] sm:$0xff]
    %v392 = vld [vmem:[#allocation7 + $0x148] sm:$0xff]
    %v393 = vld [vmem:[#allocation7 + $0x150] sm:$0xff]
    %v394 = vld [vmem:[#allocation7 + $0x158] sm:$0xff]
    %v395 = vld [vmem:[#allocation7 + $0x160] sm:$0xff]
    %v396 = vld [vmem:[#allocation7 + $0x168] sm:$0xff]
    %v397 = vld [vmem:[#allocation7 + $0x170] sm:$0xff]
    %v398 = vld [vmem:[#allocation7 + $0x178] sm:$0xff]
    %v399 = vld [vmem:[#allocation7 + $0x180] sm:$0xff]
    %v400 = vld [vmem:[#allocation7 + $0x188] sm:$0xff]
    %v401 = vld [vmem:[#allocation7 + $0x190] sm:$0xff]
    %v402 = vld [vmem:[#allocation7 + $0x198] sm:$0xff]
    %v403 = vld [vmem:[#allocation7 + $0x1a0] sm:$0xff]
    %v404 = vld [vmem:[#allocation7 + $0x1a8] sm:$0xff]
    %v405 = vld [vmem:[#allocation7 + $0x1b0] sm:$0xff]
    %v406 = vld [vmem:[#allocation7 + $0x1b8] sm:$0xff]
    %v407 = vld [vmem:[#allocation7 + $0x1c0] sm:$0xff]
    %v408 = vld [vmem:[#allocation7 + $0x1c8] sm:$0xff]
    %v409 = vld [vmem:[#allocation7 + $0x1d0] sm:$0xff]
    %v410 = vld [vmem:[#allocation7 + $0x1d8] sm:$0xff]
    %v411 = vld [vmem:[#allocation7 + $0x1e0] sm:$0xff]
    %v412 = vld [vmem:[#allocation7 + $0x1e8] sm:$0xff]
    %v413 = vld [vmem:[#allocation7 + $0x1f0] sm:$0xff]
    %v414 = vld [vmem:[#allocation7 + $0x1f8] sm:$0xff]
    %v415 = vld [vmem:[#allocation7 + $0x200] sm:$0xff]
    %v416 = vld [vmem:[#allocation7 + $0x208] sm:$0xff]
    %v417 = vld [vmem:[#allocation7 + $0x210] sm:$0xff]
    %v418 = vld [vmem:[#allocation7 + $0x218] sm:$0xff]
    %v419 = vld [vmem:[#allocation7 + $0x220] sm:$0xff]
    %v420 = vld [vmem:[#allocation7 + $0x228] sm:$0xff]
    %v421 = vld [vmem:[#allocation7 + $0x230] sm:$0xff]
    %v422 = vld [vmem:[#allocation7 + $0x238] sm:$0xff]
    %v423 = vld [vmem:[#allocation7 + $0x240] sm:$0xff]
    %v424 = vld [vmem:[#allocation7 + $0x248] sm:$0xff]
    %v425 = vld [vmem:[#allocation7 + $0x250] sm:$0xff]
    %v426 = vld [vmem:[#allocation7 + $0x258] sm:$0xff]
    %v427 = vld [vmem:[#allocation7 + $0x260] sm:$0xff]
    %v428 = vld [vmem:[#allocation7 + $0x268] sm:$0xff]
    %v429 = vld [vmem:[#allocation7 + $0x270] sm:$0xff]
    %v430 = vld [vmem:[#allocation7 + $0x278] sm:$0xff]
    %v431 = vld [vmem:[#allocation7 + $0x280] sm:$0xff]
    %v432 = vld [vmem:[#allocation7 + $0x288] sm:$0xff]
    %v433 = vld [vmem:[#allocation7 + $0x290] sm:$0xff]
    %v434 = vld [vmem:[#allocation7 + $0x298] sm:$0xff]
    %v435 = vld [vmem:[#allocation7 + $0x2a0] sm:$0xff]
    %v436 = vld [vmem:[#allocation7 + $0x2a8] sm:$0xff]
    %v437 = vld [vmem:[#allocation7 + $0x2b0] sm:$0xff]
    %v438 = vld [vmem:[#allocation7 + $0x2b8] sm:$0xff]
    %v439 = vld [vmem:[#allocation7 + $0x2c0] sm:$0xff]
    %v440 = vld [vmem:[#allocation7 + $0x2c8] sm:$0xff]
    %v441 = vld [vmem:[#allocation7 + $0x2d0] sm:$0xff]
    %v442 = vld [vmem:[#allocation7 + $0x2d8] sm:$0xff]
    %v443 = vld [vmem:[#allocation7 + $0x2e0] sm:$0xff]
    %v444 = vld [vmem:[#allocation7 + $0x2e8] sm:$0xff]
    %v445 = vld [vmem:[#allocation7 + $0x2f0] sm:$0xff]
    %v446 = vld [vmem:[#allocation7 + $0x2f8] sm:$0xff]
    %v447 = vld [vmem:[#allocation7 + $0x300] sm:$0xff]
    %v448 = vld [vmem:[#allocation7 + $0x308] sm:$0xff]
    %v449 = vld [vmem:[#allocation7 + $0x310] sm:$0xff]
    %v450 = vld [vmem:[#allocation7 + $0x318] sm:$0xff]
    %v451 = vld [vmem:[#allocation7 + $0x320] sm:$0xff]
    %v452 = vld [vmem:[#allocation7 + $0x328] sm:$0xff]
    %v453 = vld [vmem:[#allocation7 + $0x330] sm:$0xff]
    %v454 = vld [vmem:[#allocation7 + $0x338] sm:$0xff]
    %v455 = vld [vmem:[#allocation7 + $0x340] sm:$0xff]
    %v456 = vld [vmem:[#allocation7 + $0x348] sm:$0xff]
    %v457 = vld [vmem:[#allocation7 + $0x350] sm:$0xff]
    %v458 = vld [vmem:[#allocation7 + $0x358] sm:$0xff]
    %v459 = vld [vmem:[#allocation7 + $0x360] sm:$0xff]
    %v460 = vld [vmem:[#allocation7 + $0x368] sm:$0xff]
    %v461 = vld [vmem:[#allocation7 + $0x370] sm:$0xff]
    %v462 = vld [vmem:[#allocation7 + $0x378] sm:$0xff]
    %v463 = vld [vmem:[#allocation7 + $0x380] sm:$0xff]
    %v464 = vld [vmem:[#allocation7 + $0x388] sm:$0xff]
    %v465 = vld [vmem:[#allocation7 + $0x390] sm:$0xff]
    %v466 = vld [vmem:[#allocation7 + $0x398] sm:$0xff]
    %v467 = vld [vmem:[#allocation7 + $0x3a0] sm:$0xff]
    %v468 = vld [vmem:[#allocation7 + $0x3a8] sm:$0xff]
    %v469 = vld [vmem:[#allocation7 + $0x3b0] sm:$0xff]
    %v470 = vld [vmem:[#allocation7 + $0x3b8] sm:$0xff]
    %v471 = vld [vmem:[#allocation7 + $0x3c0] sm:$0xff]
    %v472 = vld [vmem:[#allocation7 + $0x3c8] sm:$0xff]
    %v473 = vld [vmem:[#allocation7 + $0x3d0] sm:$0xff]
    %v474 = vld [vmem:[#allocation7 + $0x3d8] sm:$0xff]
    %v475 = vld [vmem:[#allocation7 + $0x3e0] sm:$0xff]
    %v476 = vld [vmem:[#allocation7 + $0x3e8] sm:$0xff]
    %v477 = vld [vmem:[#allocation7 + $0x3f0] sm:$0xff]
    %v478 = vld [vmem:[#allocation7 + $0x3f8] sm:$0xff]
    %v479 = vld [vmem:[#allocation7 + $0x400] sm:$0xff]
    %v480 = vld [vmem:[#allocation7 + $0x408] sm:$0xff]
    %v481 = vld [vmem:[#allocation7 + $0x410] sm:$0xff]
    %v482 = vld [vmem:[#allocation7 + $0x418] sm:$0xff]
    %v483 = vld [vmem:[#allocation7 + $0x420] sm:$0xff]
    %v484 = vld [vmem:[#allocation7 + $0x428] sm:$0xff]
    %v485 = vld [vmem:[#allocation7 + $0x430] sm:$0xff]
    %v486 = vld [vmem:[#allocation7 + $0x438] sm:$0xff]
    %v487 = vld [vmem:[#allocation7 + $0x440] sm:$0xff]
    %v488 = vld [vmem:[#allocation7 + $0x448] sm:$0xff]
    %v489 = vld [vmem:[#allocation7 + $0x450] sm:$0xff]
    %v490 = vld [vmem:[#allocation7 + $0x458] sm:$0xff]
    %v491 = vld [vmem:[#allocation7 + $0x460] sm:$0xff]
    %v492 = vld [vmem:[#allocation7 + $0x468] sm:$0xff]
    %v493 = vld [vmem:[#allocation7 + $0x470] sm:$0xff]
    %v494 = vld [vmem:[#allocation7 + $0x478] sm:$0xff]
    %v495 = vld [vmem:[#allocation7 + $0x480] sm:$0xff]
    %v496 = vld [vmem:[#allocation7 + $0x488] sm:$0xff]
    %v497 = vld [vmem:[#allocation7 + $0x490] sm:$0xff]
    %v498 = vld [vmem:[#allocation7 + $0x498] sm:$0xff]
    %v499 = vld [vmem:[#allocation7 + $0x4a0] sm:$0xff]
    %v500 = vld [vmem:[#allocation7 + $0x4a8] sm:$0xff]
    %v501 = vld [vmem:[#allocation7 + $0x4b0] sm:$0xff]
    %v502 = vld [vmem:[#allocation7 + $0x4b8] sm:$0xff]
    %v503 = vld [vmem:[#allocation7 + $0x4c0] sm:$0xff]
    %v504 = vld [vmem:[#allocation7 + $0x4c8] sm:$0xff]
    %v505 = vld [vmem:[#allocation7 + $0x4d0] sm:$0xff]
    %v506 = vld [vmem:[#allocation7 + $0x4d8] sm:$0xff]
    %v507 = vld [vmem:[#allocation7 + $0x4e0] sm:$0xff]
    %v508 = vld [vmem:[#allocation7 + $0x4e8] sm:$0xff]
    %v509 = vld [vmem:[#allocation7 + $0x4f0] sm:$0xff]
    %v510 = vld [vmem:[#allocation7 + $0x4f8] sm:$0xff]
    %v511 = vld [vmem:[#allocation7 + $0x500] sm:$0xff]
    %v512 = vld [vmem:[#allocation7 + $0x508] sm:$0xff]
    %v513 = vld [vmem:[#allocation7 + $0x510] sm:$0xff]
    %v514 = vld [vmem:[#allocation7 + $0x518] sm:$0xff]
    %v515 = vld [vmem:[#allocation7 + $0x520] sm:$0xff]
    %v516 = vld [vmem:[#allocation7 + $0x528] sm:$0xff]
    %v517 = vld [vmem:[#allocation7 + $0x530] sm:$0xff]
    %v518 = vld [vmem:[#allocation7 + $0x538] sm:$0xff]
    %v519 = vld [vmem:[#allocation7 + $0x540] sm:$0xff]
    %v520 = vld [vmem:[#allocation7 + $0x548] sm:$0xff]
    %v521 = vld [vmem:[#allocation7 + $0x550] sm:$0xff]
    %v522 = vld [vmem:[#allocation7 + $0x558] sm:$0xff]
    %v523 = vld [vmem:[#allocation7 + $0x560] sm:$0xff]
    %v524 = vld [vmem:[#allocation7 + $0x568] sm:$0xff]
    %v525 = vld [vmem:[#allocation7 + $0x570] sm:$0xff]
    %v526 = vld [vmem:[#allocation7 + $0x578] sm:$0xff]
    %v527 = vld [vmem:[#allocation7 + $0x580] sm:$0xff]
    %v528 = vld [vmem:[#allocation7 + $0x588] sm:$0xff]
    %v529 = vld [vmem:[#allocation7 + $0x590] sm:$0xff]
    %v530 = vld [vmem:[#allocation7 + $0x598] sm:$0xff]
    %v531 = vld [vmem:[#allocation7 + $0x5a0] sm:$0xff]
    %v532 = vld [vmem:[#allocation7 + $0x5a8] sm:$0xff]
    %v533 = vld [vmem:[#allocation7 + $0x5b0] sm:$0xff]
    %v534 = vld [vmem:[#allocation7 + $0x5b8] sm:$0xff]
    %v535 = vld [vmem:[#allocation7 + $0x5c0] sm:$0xff]
    %v536 = vld [vmem:[#allocation7 + $0x5c8] sm:$0xff]
    %v537 = vld [vmem:[#allocation7 + $0x5d0] sm:$0xff]
    %v538 = vld [vmem:[#allocation7 + $0x5d8] sm:$0xff]
    %v539 = vld [vmem:[#allocation7 + $0x5e0] sm:$0xff]
    %v540 = vld [vmem:[#allocation7 + $0x5e8] sm:$0xff]
    %v541 = vld [vmem:[#allocation7 + $0x5f0] sm:$0xff]
    %v542 = vld [vmem:[#allocation7 + $0x5f8] sm:$0xff]
    %v543 = vld [vmem:[#allocation7 + $0x600] sm:$0xff]
    %v544 = vld [vmem:[#allocation7 + $0x608] sm:$0xff]
    %v545 = vld [vmem:[#allocation7 + $0x610] sm:$0xff]
    %v546 = vld [vmem:[#allocation7 + $0x618] sm:$0xff]
    %v547 = vld [vmem:[#allocation7 + $0x620] sm:$0xff]
    %v548 = vld [vmem:[#allocation7 + $0x628] sm:$0xff]
    %v549 = vld [vmem:[#allocation7 + $0x630] sm:$0xff]
    %v550 = vld [vmem:[#allocation7 + $0x638] sm:$0xff]
    %v551 = vld [vmem:[#allocation7 + $0x640] sm:$0xff]
    %v552 = vld [vmem:[#allocation7 + $0x648] sm:$0xff]
    %v553 = vld [vmem:[#allocation7 + $0x650] sm:$0xff]
    %v554 = vld [vmem:[#allocation7 + $0x658] sm:$0xff]
    %v555 = vld [vmem:[#allocation7 + $0x660] sm:$0xff]
    %v556 = vld [vmem:[#allocation7 + $0x668] sm:$0xff]
    %v557 = vld [vmem:[#allocation7 + $0x670] sm:$0xff]
    %v558 = vld [vmem:[#allocation7 + $0x678] sm:$0xff]
    %v559 = vld [vmem:[#allocation7 + $0x680] sm:$0xff]
    %v560 = vld [vmem:[#allocation7 + $0x688] sm:$0xff]
    %v561 = vld [vmem:[#allocation7 + $0x690] sm:$0xff]
    %v562 = vld [vmem:[#allocation7 + $0x698] sm:$0xff]
    %v563 = vld [vmem:[#allocation7 + $0x6a0] sm:$0xff]
    %v564 = vld [vmem:[#allocation7 + $0x6a8] sm:$0xff]
    %v565 = vld [vmem:[#allocation7 + $0x6b0] sm:$0xff]
    %v566 = vld [vmem:[#allocation7 + $0x6b8] sm:$0xff]
    %v567 = vld [vmem:[#allocation7 + $0x6c0] sm:$0xff]
    %v568 = vld [vmem:[#allocation7 + $0x6c8] sm:$0xff]
    %v569 = vld [vmem:[#allocation7 + $0x6d0] sm:$0xff]
    %v570 = vld [vmem:[#allocation7 + $0x6d8] sm:$0xff]
    %v571 = vld [vmem:[#allocation7 + $0x6e0] sm:$0xff]
    %v572 = vld [vmem:[#allocation7 + $0x6e8] sm:$0xff]
    %v573 = vld [vmem:[#allocation7 + $0x6f0] sm:$0xff]
    %v574 = vld [vmem:[#allocation7 + $0x6f8] sm:$0xff]
    %v575 = vld [vmem:[#allocation7 + $0x700] sm:$0xff]
    %v576 = vld [vmem:[#allocation7 + $0x708] sm:$0xff]
    %v577 = vld [vmem:[#allocation7 + $0x710] sm:$0xff]
    %v578 = vld [vmem:[#allocation7 + $0x718] sm:$0xff]
    %v579 = vld [vmem:[#allocation7 + $0x720] sm:$0xff]
    %v580 = vld [vmem:[#allocation7 + $0x728] sm:$0xff]
    %v581 = vld [vmem:[#allocation7 + $0x730] sm:$0xff]
    %v582 = vld [vmem:[#allocation7 + $0x738] sm:$0xff]
    %v583 = vld [vmem:[#allocation7 + $0x740] sm:$0xff]
    %v584 = vld [vmem:[#allocation7 + $0x748] sm:$0xff]
    %v585 = vld [vmem:[#allocation7 + $0x750] sm:$0xff]
    %v586 = vld [vmem:[#allocation7 + $0x758] sm:$0xff]
    %v587 = vld [vmem:[#allocation7 + $0x760] sm:$0xff]
    %v588 = vld [vmem:[#allocation7 + $0x768] sm:$0xff]
    %v589 = vld [vmem:[#allocation7 + $0x770] sm:$0xff]
    %v590 = vld [vmem:[#allocation7 + $0x778] sm:$0xff]
    %v591 = vld [vmem:[#allocation7 + $0x780] sm:$0xff]
    %v592 = vld [vmem:[#allocation7 + $0x788] sm:$0xff]
    %v593 = vld [vmem:[#allocation7 + $0x790] sm:$0xff]
    %v594 = vld [vmem:[#allocation7 + $0x798] sm:$0xff]
    %v595 = vld [vmem:[#allocation7 + $0x7a0] sm:$0xff]
    %v596 = vld [vmem:[#allocation7 + $0x7a8] sm:$0xff]
    %v597 = vld [vmem:[#allocation7 + $0x7b0] sm:$0xff]
    %v598 = vld [vmem:[#allocation7 + $0x7b8] sm:$0xff]
    %v599 = vld [vmem:[#allocation7 + $0x7c0] sm:$0xff]
    %v600 = vld [vmem:[#allocation7 + $0x7c8] sm:$0xff]
    %v601 = vld [vmem:[#allocation7 + $0x7d0] sm:$0xff]
    %v602 = vld [vmem:[#allocation7 + $0x7d8] sm:$0xff]
    %v603 = vld [vmem:[#allocation7 + $0x7e0] sm:$0xff]
    %v604 = vld [vmem:[#allocation7 + $0x7e8] sm:$0xff]
    %v605 = vld [vmem:[#allocation7 + $0x7f0] sm:$0xff]
    %v606 = vld [vmem:[#allocation7 + $0x7f8] sm:$0xff]
    %v607 = vld [vmem:[%s4] sm:$0xf]
    %v609 = vlaneseq
    %v610 = vshrl.u32 %v609, 7
    %v611 = vsub.s32 0, %v610
    %v612 = vrot.slane %v607, %v611
    %v613 = vlaneseq
    %v614 = vshrl.u32 %v613, 7
    %v615 = vsub.s32 1, %v614
    %v616 = vrot.slane %v607, %v615
    %v617 = vlaneseq
    %v618 = vshrl.u32 %v617, 7
    %v619 = vsub.s32 2, %v618
    %v620 = vrot.slane %v607, %v619
    %v621 = vlaneseq
    %v622 = vshrl.u32 %v621, 7
    %v623 = vsub.s32 3, %v622
    %v624 = vrot.slane %v607, %v623
    %629 = vmatprep.subr.mxu0 %v352
    %630 = vmatpush1.msra.mxu0 %v351
    %631 = vmatprep.subr.mxu0 %v356
    %632 = vmatpush1.msra.mxu0 %v355
    %633 = vmatprep.subr.mxu0 %v360
    %634 = vmatpush1.msra.mxu0 %v359
    %635 = vmatprep.subr.mxu0 %v364
    %636 = vmatpush1.msra.mxu0 %v363
    %637 = vmatprep.subr.mxu0 %v368
    %638 = vmatpush1.msra.mxu0 %v367
    %639 = vmatprep.subr.mxu0 %v372
    %640 = vmatpush1.msra.mxu0 %v371
    %641 = vmatprep.subr.mxu0 %v376
    %642 = vmatpush1.msra.mxu0 %v375
    %643 = vmatprep.subr.mxu0 %v380
    %644 = vmatpush1.msra.mxu0 %v379
    %645 = vmatprep.subr.mxu0 %v384
    %646 = vmatpush1.msra.mxu0 %v383
    %647 = vmatprep.subr.mxu0 %v388
    %648 = vmatpush1.msra.mxu0 %v387
    %649 = vmatprep.subr.mxu0 %v392
    %650 = vmatpush1.msra.mxu0 %v391
    %651 = vmatprep.subr.mxu0 %v396
    %652 = vmatpush1.msra.mxu0 %v395
    %653 = vmatprep.subr.mxu0 %v400
    %654 = vmatpush1.msra.mxu0 %v399
    %655 = vmatprep.subr.mxu0 %v404
    %656 = vmatpush1.msra.mxu0 %v403
    %657 = vmatprep.subr.mxu0 %v408
    %658 = vmatpush1.msra.mxu0 %v407
    %659 = vmatprep.subr.mxu0 %v412
    %660 = vmatpush1.msra.mxu0 %v411
    %661 = vmatprep.subr.mxu0 %v416
    %662 = vmatpush1.msra.mxu0 %v415
    %663 = vmatprep.subr.mxu0 %v420
    %664 = vmatpush1.msra.mxu0 %v419
    %665 = vmatprep.subr.mxu0 %v424
    %666 = vmatpush1.msra.mxu0 %v423
    %667 = vmatprep.subr.mxu0 %v428
    %668 = vmatpush1.msra.mxu0 %v427
    %669 = vmatprep.subr.mxu0 %v432
    %670 = vmatpush1.msra.mxu0 %v431
    %671 = vmatprep.subr.mxu0 %v436
    %672 = vmatpush1.msra.mxu0 %v435
    %673 = vmatprep.subr.mxu0 %v440
    %674 = vmatpush1.msra.mxu0 %v439
    %675 = vmatprep.subr.mxu0 %v444
    %676 = vmatpush1.msra.mxu0 %v443
    %677 = vmatprep.subr.mxu0 %v448
    %678 = vmatpush1.msra.mxu0 %v447
    %679 = vmatprep.subr.mxu0 %v452
    %680 = vmatpush1.msra.mxu0 %v451
    %681 = vmatprep.subr.mxu0 %v456
    %682 = vmatpush1.msra.mxu0 %v455
    %683 = vmatprep.subr.mxu0 %v460
    %684 = vmatpush1.msra.mxu0 %v459
    %685 = vmatprep.subr.mxu0 %v464
    %686 = vmatpush1.msra.mxu0 %v463
    %687 = vmatprep.subr.mxu0 %v468
    %688 = vmatpush1.msra.mxu0 %v467
    %689 = vmatprep.subr.mxu0 %v472
    %690 = vmatpush1.msra.mxu0 %v471
    %691 = vmatprep.subr.mxu0 %v476
    %692 = vmatpush1.msra.mxu0 %v475
    %693 = vmatprep.mubr.f32.mxu0 %v348
    %694 = vmatmul.mubr.f32.gmra.mrb[0].mxu0 %v347
    %v695 = vpop.f32.mrb[0].mxu0
    %v696 = vadd.f32 %v612, %v695
    %v697 = vpop.f32.mrb[0].mxu0
    %v698 = vadd.f32 %v616, %v697
    %699 = vdwg.mxu0
    %700 = vmatprep.subr.mxu0 %v480
    %701 = vmatpush1.msra.mxu0 %v479
    %702 = vmatprep.subr.mxu0 %v484
    %703 = vmatpush1.msra.mxu0 %v483
    %704 = vmatprep.subr.mxu0 %v488
    %705 = vmatpush1.msra.mxu0 %v487
    %706 = vmatprep.subr.mxu0 %v492
    %707 = vmatpush1.msra.mxu0 %v491
    %708 = vmatprep.subr.mxu0 %v496
    %709 = vmatpush1.msra.mxu0 %v495
    %710 = vmatprep.subr.mxu0 %v500
    %711 = vmatpush1.msra.mxu0 %v499
    %712 = vmatprep.subr.mxu0 %v504
    %713 = vmatpush1.msra.mxu0 %v503
    %714 = vmatprep.subr.mxu0 %v508
    %715 = vmatpush1.msra.mxu0 %v507
    %716 = vmatprep.subr.mxu0 %v512
    %717 = vmatpush1.msra.mxu0 %v511
    %718 = vmatprep.subr.mxu0 %v516
    %719 = vmatpush1.msra.mxu0 %v515
    %720 = vmatprep.subr.mxu0 %v520
    %721 = vmatpush1.msra.mxu0 %v519
    %722 = vmatprep.subr.mxu0 %v524
    %723 = vmatpush1.msra.mxu0 %v523
    %724 = vmatprep.subr.mxu0 %v528
    %725 = vmatpush1.msra.mxu0 %v527
    %726 = vmatprep.subr.mxu0 %v532
    %727 = vmatpush1.msra.mxu0 %v531
    %728 = vmatprep.subr.mxu0 %v536
    %729 = vmatpush1.msra.mxu0 %v535
    %730 = vmatprep.subr.mxu0 %v540
    %731 = vmatpush1.msra.mxu0 %v539
    %732 = vmatprep.subr.mxu0 %v544
    %733 = vmatpush1.msra.mxu0 %v543
    %734 = vmatprep.subr.mxu0 %v548
    %735 = vmatpush1.msra.mxu0 %v547
    %736 = vmatprep.subr.mxu0 %v552
    %737 = vmatpush1.msra.mxu0 %v551
    %738 = vmatprep.subr.mxu0 %v556
    %739 = vmatpush1.msra.mxu0 %v555
    %740 = vmatprep.subr.mxu0 %v560
    %741 = vmatpush1.msra.mxu0 %v559
    %742 = vmatprep.subr.mxu0 %v564
    %743 = vmatpush1.msra.mxu0 %v563
    %744 = vmatprep.subr.mxu0 %v568
    %745 = vmatpush1.msra.mxu0 %v567
    %746 = vmatprep.subr.mxu0 %v572
    %747 = vmatpush1.msra.mxu0 %v571
    %748 = vmatprep.subr.mxu0 %v576
    %749 = vmatpush1.msra.mxu0 %v575
    %750 = vmatprep.subr.mxu0 %v580
    %751 = vmatpush1.msra.mxu0 %v579
    %752 = vmatprep.subr.mxu0 %v584
    %753 = vmatpush1.msra.mxu0 %v583
    %754 = vmatprep.subr.mxu0 %v588
    %755 = vmatpush1.msra.mxu0 %v587
    %756 = vmatprep.subr.mxu0 %v592
    %757 = vmatpush1.msra.mxu0 %v591
    %758 = vmatprep.subr.mxu0 %v596
    %759 = vmatpush1.msra.mxu0 %v595
    %760 = vmatprep.subr.mxu0 %v600
    %761 = vmatpush1.msra.mxu0 %v599
    %762 = vmatprep.subr.mxu0 %v604
    %763 = vmatpush1.msra.mxu0 %v603
    %764 = vmatprep.mubr.f32.mxu0 %v350
    %765 = vmatmul.mubr.f32.gmra.mrb[0].mxu0 %v349
    %v766 = vpop.f32.mrb[0].mxu0
    %v767 = vadd.f32 %v696, %v766
    %v768 = vpop.f32.mrb[0].mxu0
    %v769 = vadd.f32 %v698, %v768
    %770 = vdwg.mxu0
    %771 = vmatprep.subr.mxu0 %v354
    %772 = vmatpush1.msra.mxu0 %v353
    %773 = vmatprep.subr.mxu0 %v358
    %774 = vmatpush1.msra.mxu0 %v357
    %775 = vmatprep.subr.mxu0 %v362
    %776 = vmatpush1.msra.mxu0 %v361
    %777 = vmatprep.subr.mxu0 %v366
    %778 = vmatpush1.msra.mxu0 %v365
    %779 = vmatprep.subr.mxu0 %v370
    %780 = vmatpush1.msra.mxu0 %v369
    %781 = vmatprep.subr.mxu0 %v374
    %782 = vmatpush1.msra.mxu0 %v373
    %783 = vmatprep.subr.mxu0 %v378
    %784 = vmatpush1.msra.mxu0 %v377
    %785 = vmatprep.subr.mxu0 %v382
    %786 = vmatpush1.msra.mxu0 %v381
    %787 = vmatprep.subr.mxu0 %v386
    %788 = vmatpush1.msra.mxu0 %v385
    %789 = vmatprep.subr.mxu0 %v390
    %790 = vmatpush1.msra.mxu0 %v389
    %791 = vmatprep.subr.mxu0 %v394
    %792 = vmatpush1.msra.mxu0 %v393
    %793 = vmatprep.subr.mxu0 %v398
    %794 = vmatpush1.msra.mxu0 %v397
    %795 = vmatprep.subr.mxu0 %v402
    %796 = vmatpush1.msra.mxu0 %v401
    %797 = vmatprep.subr.mxu0 %v406
    %798 = vmatpush1.msra.mxu0 %v405
    %799 = vmatprep.subr.mxu0 %v410
    %800 = vmatpush1.msra.mxu0 %v409
    %801 = vmatprep.subr.mxu0 %v414
    %802 = vmatpush1.msra.mxu0 %v413
    %803 = vmatprep.subr.mxu0 %v418
    %804 = vmatpush1.msra.mxu0 %v417
    %805 = vmatprep.subr.mxu0 %v422
    %806 = vmatpush1.msra.mxu0 %v421
    %807 = vmatprep.subr.mxu0 %v426
    %808 = vmatpush1.msra.mxu0 %v425
    %809 = vmatprep.subr.mxu0 %v430
    %810 = vmatpush1.msra.mxu0 %v429
    %811 = vmatprep.subr.mxu0 %v434
    %812 = vmatpush1.msra.mxu0 %v433
    %813 = vmatprep.subr.mxu0 %v438
    %814 = vmatpush1.msra.mxu0 %v437
    %815 = vmatprep.subr.mxu0 %v442
    %816 = vmatpush1.msra.mxu0 %v441
    %817 = vmatprep.subr.mxu0 %v446
    %818 = vmatpush1.msra.mxu0 %v445
    %819 = vmatprep.subr.mxu0 %v450
    %820 = vmatpush1.msra.mxu0 %v449
    %821 = vmatprep.subr.mxu0 %v454
    %822 = vmatpush1.msra.mxu0 %v453
    %823 = vmatprep.subr.mxu0 %v458
    %824 = vmatpush1.msra.mxu0 %v457
    %825 = vmatprep.subr.mxu0 %v462
    %826 = vmatpush1.msra.mxu0 %v461
    %827 = vmatprep.subr.mxu0 %v466
    %828 = vmatpush1.msra.mxu0 %v465
    %829 = vmatprep.subr.mxu0 %v470
    %830 = vmatpush1.msra.mxu0 %v469
    %831 = vmatprep.subr.mxu0 %v474
    %832 = vmatpush1.msra.mxu0 %v473
    %833 = vmatprep.subr.mxu0 %v478
    %834 = vmatpush1.msra.mxu0 %v477
    %835 = vmatprep.mubr.f32.mxu0 %v348
    %836 = vmatmul.mubr.f32.gmra.mrb[0].mxu0 %v347
    %v837 = vpop.f32.mrb[0].mxu0
    %v838 = vadd.f32 %v620, %v837
    %v839 = vpop.f32.mrb[0].mxu0
    %v840 = vadd.f32 %v624, %v839
    %841 = vdwg.mxu0
    %842 = vmatprep.subr.mxu0 %v482
    %843 = vmatpush1.msra.mxu0 %v481
    %844 = vmatprep.subr.mxu0 %v486
    %845 = vmatpush1.msra.mxu0 %v485
    %846 = vmatprep.subr.mxu0 %v490
    %847 = vmatpush1.msra.mxu0 %v489
    %848 = vmatprep.subr.mxu0 %v494
    %849 = vmatpush1.msra.mxu0 %v493
    %850 = vmatprep.subr.mxu0 %v498
    %851 = vmatpush1.msra.mxu0 %v497
    %852 = vmatprep.subr.mxu0 %v502
    %853 = vmatpush1.msra.mxu0 %v501
    %854 = vmatprep.subr.mxu0 %v506
    %855 = vmatpush1.msra.mxu0 %v505
    %856 = vmatprep.subr.mxu0 %v510
    %857 = vmatpush1.msra.mxu0 %v509
    %858 = vmatprep.subr.mxu0 %v514
    %859 = vmatpush1.msra.mxu0 %v513
    %860 = vmatprep.subr.mxu0 %v518
    %861 = vmatpush1.msra.mxu0 %v517
    %862 = vmatprep.subr.mxu0 %v522
    %863 = vmatpush1.msra.mxu0 %v521
    %864 = vmatprep.subr.mxu0 %v526
    %865 = vmatpush1.msra.mxu0 %v525
    %866 = vmatprep.subr.mxu0 %v530
    %867 = vmatpush1.msra.mxu0 %v529
    %868 = vmatprep.subr.mxu0 %v534
    %869 = vmatpush1.msra.mxu0 %v533
    %870 = vmatprep.subr.mxu0 %v538
    %871 = vmatpush1.msra.mxu0 %v537
    %872 = vmatprep.subr.mxu0 %v542
    %873 = vmatpush1.msra.mxu0 %v541
    %874 = vmatprep.subr.mxu0 %v546
    %875 = vmatpush1.msra.mxu0 %v545
    %876 = vmatprep.subr.mxu0 %v550
    %877 = vmatpush1.msra.mxu0 %v549
    %878 = vmatprep.subr.mxu0 %v554
    %879 = vmatpush1.msra.mxu0 %v553
    %880 = vmatprep.subr.mxu0 %v558
    %881 = vmatpush1.msra.mxu0 %v557
    %882 = vmatprep.subr.mxu0 %v562
    %883 = vmatpush1.msra.mxu0 %v561
    %884 = vmatprep.subr.mxu0 %v566
    %885 = vmatpush1.msra.mxu0 %v565
    %886 = vmatprep.subr.mxu0 %v570
    %887 = vmatpush1.msra.mxu0 %v569
    %888 = vmatprep.subr.mxu0 %v574
    %889 = vmatpush1.msra.mxu0 %v573
    %890 = vmatprep.subr.mxu0 %v578
    %891 = vmatpush1.msra.mxu0 %v577
    %892 = vmatprep.subr.mxu0 %v582
    %893 = vmatpush1.msra.mxu0 %v581
    %894 = vmatprep.subr.mxu0 %v586
    %895 = vmatpush1.msra.mxu0 %v585
    %896 = vmatprep.subr.mxu0 %v590
    %897 = vmatpush1.msra.mxu0 %v589
    %898 = vmatprep.subr.mxu0 %v594
    %899 = vmatpush1.msra.mxu0 %v593
    %900 = vmatprep.subr.mxu0 %v598
    %901 = vmatpush1.msra.mxu0 %v597
    %902 = vmatprep.subr.mxu0 %v602
    %903 = vmatpush1.msra.mxu0 %v601
    %904 = vmatprep.subr.mxu0 %v606
    %905 = vmatpush1.msra.mxu0 %v605
    %906 = vmatprep.mubr.f32.mxu0 %v350
    %907 = vmatmul.mubr.f32.gmra.mrb[0].mxu0 %v349
    %v908 = vpop.f32.mrb[0].mxu0
    %v909 = vadd.f32 %v838, %v908
    %v910 = vpop.f32.mrb[0].mxu0
    %v911 = vadd.f32 %v840, %v910
    %912 = vdwg.mxu0
    %913 = vst [vmem:[#allocation8] sm:$0xff] %v767
    %914 = vst [vmem:[#allocation8 + $0x8] sm:$0xff] %v769
    %915 = vst [vmem:[#allocation8 + $0x10] sm:$0xff] %v909
    %916 = vst [vmem:[#allocation8 + $0x18] sm:$0xff] %v911
    // Predicated region
    $region34: #{tpu_custom_call.1} parent=1 // pred_check
      _
    $region35: #{tpu_custom_call.1} parent=1 // pred_check_branch
      %918 = sbr.rel (0) target = $region37
    $region36: #{tpu_custom_call.1} parent=1 // pred_region
      %s920 = ssub.s32 512, 512
      %921 = vsyncadd [#allocation4], %s920
      %s923 = sshll.u32 [#allocation8], 4
      %s924 = int_to_ptr.vmem [resolvable:$true] %s923
      %926 = dma.vmem_to_hbm [thread:$0]  %s924, 512, %s5, [#allocation4]
    $region37: #{tpu_custom_call.1} parent=1 // pred_fallthru
      _
    // Predicated region
    $region38: #{tpu_custom_call.1} parent=1 // pred_check
      _
    $region39: #{tpu_custom_call.1} parent=1 // pred_check_branch
      %928 = sbr.rel (0) target = $region41
    $region40: #{tpu_custom_call.1} parent=1 // pred_region
      %929 = dma.done [#allocation4], 512
    $region41: #{tpu_custom_call.1} parent=1 // pred_fallthru
      _
    %930 = vsyncpa [#allocation3], 1
    %931 = vsyncpa [#allocation6], 1
    %932 = vsyncpa [#allocation4], 1

</llo_original>
